<compile_context>
chip_gen: v5e
topology: v5e:2x2
jax: 0.10.0
libtpu: 0.0.40
codegen_flags: <defaults>
</compile_context>

<pallas_src>
import functools

import jax
import jax.numpy as jnp
from jax.experimental import pallas as pl
from jax.experimental.pallas import tpu as pltpu


# Bias sentinel for padded vocab columns: lognum ~ -2e30 (finite in f32), never
# wins the row max, contributes exp(.) == 0 to the denominator, and any padded
# columns written to VMEM are masked off by the bounded output writeback.
_NEG_BIG = -1e30


def _round_up(x, m):
    return (x + m - 1) // m * m


def _log_sigmoid(x):
    # Stable log(sigmoid(x)) from ops that lower cleanly in Mosaic.
    # (log1p would be marginally more precise; the difference is << tolerance.)
    return jnp.minimum(x, 0.0) - jnp.log(1.0 + jnp.exp(-jnp.abs(x)))


def _ssmax_fused_kernel(x_ref, w_ref, b_ref, o_ref, m_ref, l_ref, *, tv):
    """Grid (row-tile i, vocab-tile k).  o_ref is a VMEM-resident (tm, v_pad) stripe."""
    k = pl.program_id(1)

    @pl.when(k == 0)
    def _init():
        m_ref[...] = jnp.full(m_ref.shape, -jnp.inf, jnp.float32)
        l_ref[...] = jnp.zeros(l_ref.shape, jnp.float32)

    # (tm, H) x (tv, H) -> (tm, tv), contracting the shared H axis.
    # bf16 operands, f32 accumulation on the MXU; weight keeps (V, H) layout.
    logits = jax.lax.dot_general(
        x_ref[...], w_ref[...],
        dimension_numbers=(((1,), (1,)), ((), ())),
        preferred_element_type=jnp.float32,
    ) + b_ref[...]                                   # (1, tv) f32 bias broadcast

    # sigsoftmax numerator in log space: log(exp(l) * sigmoid(l)) = l + log_sigmoid(l)
    lognum = logits + _log_sigmoid(logits)

    # Write the unnormalized tile into the resident output stripe (lane-aligned,
    # tv is a multiple of 128, written exactly once per column range).
    col = pl.multiple_of(k * tv, 128)
    o_ref[:, pl.ds(col, tv)] = lognum

    # Online logsumexp of lognum over the vocab tiles (overflow-safe).
    m_prev = m_ref[...]
    m_new = jnp.maximum(m_prev, jnp.max(lognum, axis=-1, keepdims=True))
    l_ref[...] = l_ref[...] * jnp.exp(m_prev - m_new) + jnp.sum(
        jnp.exp(lognum - m_new), axis=-1, keepdims=True)
    m_ref[...] = m_new

    @pl.when(k == pl.num_programs(1) - 1)
    def _finalize():
        # Normalize the whole stripe in VMEM; Pallas then writes it back once.
        logden = m_ref[...] + jnp.log(l_ref[...])
        o_ref[...] = o_ref[...] - logden


def prepare_decoder(weight, bias):
    """One-time decoder prep (hoisted out of the per-call path).

    Casts the (ntoken, nhidlast) weight to bf16 and pads the vocab axis to a
    multiple of 128, with a -1e30 bias sentinel on the padded columns.  Callers
    should cache the result and reuse it across forward calls.
    """
    v, h = weight.shape
    v_pad = _round_up(v, 128)
    w = jnp.pad(weight.astype(jnp.bfloat16), ((0, v_pad - v), (0, 0)))
    b = jnp.pad(bias.astype(jnp.float32), (0, v_pad - v),
                constant_values=_NEG_BIG).reshape(1, v_pad)
    return w, b


@functools.partial(jax.jit, static_argnames=("ntoken", "tm", "tv"))
def ssmax_forward(x, w_prep, b_prep, *, ntoken, tm=512, tv=512):
    """
    x:      (num_batches, batch_size, nhidlast) float32
    w_prep: (v_pad, nhidlast) bfloat16   -- from prepare_decoder
    b_prep: (1, v_pad)        float32    -- from prepare_decoder
    returns (num_batches*batch_size, ntoken) float32 log-probabilities.
    """
    nb, bs, h = x.shape
    n = nb * bs
    v_pad = w_prep.shape[0]

    # Per-call activation prep is tiny (N x H); the big weight prep is hoisted.
    x2 = x.reshape(n, h).astype(jnp.bfloat16)

    # ---- tile selection, sized against this generation's VMEM ---------------
    try:
        vmem_cap = int(pltpu.get_tpu_info().vmem_capacity_bytes)
    except Exception:                       # pragma: no cover - conservative fallback
        vmem_cap = 64 * 2**20               # v7x-sized => safe on every generation
    budget = int(0.70 * vmem_cap)

    # Vocab tile: multiple of 128 that divides v_pad, so every tile is lane-dense
    # and carries the bias sentinel on its own padded columns.
    tv_divisors = [c for c in range(128, v_pad + 1, 128) if v_pad % c == 0]
    tv_target = max(128, _round_up(min(tv, v_pad), 128))
    tv_eff = max([c for c in tv_divisors if c <= tv_target] or [tv_divisors[0]])

    def fixed_bytes(tv_):
        # double-buffered weight slice + bias slice
        return 2 * (tv_ * h * 2) + 2 * (tv_ * 4)

    # per row of tm: double-buffered x tile + double-buffered output stripe + m/l scratch
    per_row = 2 * (h * 2) + 2 * (v_pad * 4) + 2 * 4 * 2

    while tv_eff > 128 and (budget - fixed_bytes(tv_eff)) // per_row < 16:
        smaller = [c for c in tv_divisors if c < tv_eff]
        if not smaller:
            break
        tv_eff = max(smaller)

    tm_cap = max(16, ((budget - fixed_bytes(tv_eff)) // max(per_row, 1)) // 16 * 16)
    # TODO(synk): for vocabularies so large that even a tm=16 resident stripe
    # exceeds the VMEM budget (e.g. very large V on v7x), switch to a two-sweep
    # recompute variant instead of the resident stripe.
    tm_eff = max(16, min(_round_up(min(tm, max(n, 1)), 16), tm_cap))

    grid = (pl.cdiv(n, tm_eff), v_pad // tv_eff)

    need = fixed_bytes(tv_eff) + per_row * tm_eff
    vmem_limit = int(min(max(1.3 * need, 32 * 2**20), 0.80 * vmem_cap))

    cost = pl.CostEstimate(
        flops=2 * grid[0] * tm_eff * v_pad * h,
        transcendentals=3 * grid[0] * tm_eff * v_pad,
        bytes_accessed=(n * h * 2 + grid[0] * v_pad * h * 2 + v_pad * 4
                        + n * ntoken * 4),
    )

    out = pl.pallas_call(
        functools.partial(_ssmax_fused_kernel, tv=tv_eff),
        out_shape=jax.ShapeDtypeStruct((n, ntoken), jnp.float32),
        grid_spec=pltpu.PrefetchScalarGridSpec(
            num_scalar_prefetch=0,
            grid=grid,
            in_specs=[
                pl.BlockSpec((tm_eff, h), lambda i, k: (i, 0)),   # activations (resident over k)
                pl.BlockSpec((tv_eff, h), lambda i, k: (k, 0)),   # streamed weight slice (V, H)
                pl.BlockSpec((1, tv_eff), lambda i, k: (0, k)),   # bias slice
            ],
            out_specs=pl.BlockSpec((tm_eff, v_pad), lambda i, k: (i, 0)),  # resident row stripe
            scratch_shapes=[pltpu.VMEM((tm_eff, 1), jnp.float32),   # running max
                            pltpu.VMEM((tm_eff, 1), jnp.float32)],  # running sum
        ),
        compiler_params=pltpu.CompilerParams(
            dimension_semantics=("parallel", "arbitrary"),
            vmem_limit_bytes=vmem_limit,
        ),
        cost_estimate=cost,
    )(x2, w_prep, b_prep)

    return out


def ssmax_apply(x, weight, bias, extras, **tile_kwargs):
    """Mirror of the PyTorch module's forward.  (For repeated calls, hoist
    prepare_decoder() and call ssmax_forward directly.)"""
    w_prep, b_prep = prepare_decoder(weight, bias)
    result = {"output": ssmax_forward(x, w_prep, b_prep, ntoken=weight.shape[0],
                                      **tile_kwargs)}
    if extras.get("return_f_logits", False):
        result["f_logits"] = None  # the PyTorch module also returns None here
    return result


def _reference_bf16(x, weight, bias):
    # Same bf16-matmul / f32-accumulate numerics as the kernel.
    n = x.shape[0] * x.shape[1]
    xb = x.reshape(n, -1).astype(jnp.bfloat16)
    wb = weight.astype(jnp.bfloat16)
    logits = jnp.dot(xb, wb.T, preferred_element_type=jnp.float32) + bias
    lognum = logits + jax.nn.log_sigmoid(logits)
    return lognum - jax.scipy.special.logsumexp(lognum, axis=-1, keepdims=True)


def _reference_f32(x, weight, bias):
    # Literal module math in f32 (loose check of overall semantics).
    n = x.shape[0] * x.shape[1]
    logits = x.reshape(n, -1) @ weight.T + bias
    num = jnp.exp(logits) * jax.nn.sigmoid(logits)
    return jnp.log(num / jnp.sum(num, axis=-1, keepdims=True))


if __name__ == "__main__":
    # Small shapes consistent with the module; chosen so the row axis needs a
    # partial edge block (15 rows vs tm=16) and the vocab axis is both tiled
    # (2 tiles at tv=256) and padded (500 -> 512), exercising every code path.
    num_batches, batch_size, nhidlast, ntoken = 3, 5, 128, 500

    key = jax.random.PRNGKey(0)
    kx, kw = jax.random.split(key)

    x = jax.random.normal(kx, (num_batches, batch_size, nhidlast), dtype=jnp.float32)
    # init_weights(): bias = 0, weight ~ Uniform(-0.1, 0.1)
    initrange = 0.1
    weight = jax.random.uniform(kw, (ntoken, nhidlast), dtype=jnp.float32,
                                minval=-initrange, maxval=initrange)
    bias = jnp.zeros((ntoken,), dtype=jnp.float32)

    # One-time decoder prep (hoisted out of the per-call path), then forward.
    w_prep, b_prep = prepare_decoder(weight, bias)
    out = ssmax_forward(x, w_prep, b_prep, ntoken=ntoken, tm=128, tv=256)
    out = jax.block_until_ready(out)

    assert out.shape == (num_batches * batch_size, ntoken)
    assert bool(jnp.all(jnp.isfinite(out)))

    ref = _reference_bf16(x, weight, bias)
    err = float(jnp.max(jnp.abs(out - ref)))
    assert jnp.allclose(out, ref, atol=2e-3, rtol=2e-3), f"bf16-ref mismatch: {err}"

    ref32 = _reference_f32(x, weight, bias)
    assert jnp.allclose(out, ref32, atol=5e-2, rtol=5e-2), "f32-ref mismatch"

    # Module-style wrapper path (dict output + f_logits=None).
    result = ssmax_apply(x, weight, bias, {"return_f_logits": True}, tm=128, tv=256)
    out2 = jax.block_until_ready(result["output"])
    assert jnp.allclose(out2, out)
    assert result["f_logits"] is None

    print("KERNEL_OK")
</pallas_src>

<mosaic_0001>
module attributes {stable_mosaic.version = 11 : i64} {
  func.func @_ssmax_fused_kernel(%arg0: i32, %arg1: i32, %arg2: memref<16x128xbf16, #tpu.memory_space<vmem>>, %arg3: memref<256x128xbf16, #tpu.memory_space<vmem>>, %arg4: memref<1x256xf32, #tpu.memory_space<vmem>>, %arg5: memref<16x512xf32, #tpu.memory_space<vmem>>, %arg6: memref<16x1xf32, #tpu.memory_space<vmem>>, %arg7: memref<16x1xf32, #tpu.memory_space<vmem>>) attributes {dimension_semantics = [#tpu.dimension_semantics<parallel>, #tpu.dimension_semantics<arbitrary>], iteration_bounds = array<i64: 1, 2>, scalar_prefetch = 0 : i64, scratch_operands = 2 : i64, tpu.core_type = #tpu.core_type<tc>, window_params = [{transform_indices = @transform_0, window_bounds = array<i64: 16, 128>}, {transform_indices = @transform_1, window_bounds = array<i64: 256, 128>}, {transform_indices = @transform_2, window_bounds = array<i64: 1, 256>}, {transform_indices = @transform_3, window_bounds = array<i64: 16, 512>}]} {
    %c0_i32 = arith.constant 0 : i32
    %0 = arith.cmpi eq, %arg1, %c0_i32 : i32
    %1 = arith.extui %0 : i1 to i32
    %c0_i32_0 = arith.constant 0 : i32
    %2 = arith.cmpi ne, %1, %c0_i32_0 : i32
    scf.if %2 {
      %cst_21 = arith.constant 0xFF800000 : f32
      %43 = vector.broadcast %cst_21 : f32 to vector<16x1xf32>
      %c0_22 = arith.constant 0 : index
      %c0_23 = arith.constant 0 : index
      %44 = vector.load %arg6[%c0_22, %c0_23] : memref<16x1xf32, #tpu.memory_space<vmem>>, vector<16x1xf32>
      tpu.vector_store %arg6[%c0_22, %c0_23], %43 {strides = array<i32>} : memref<16x1xf32, #tpu.memory_space<vmem>>, vector<16x1xf32>,
      %cst_24 = arith.constant 0.000000e+00 : f32
      %45 = vector.broadcast %cst_24 : f32 to vector<16x1xf32>
      %c0_25 = arith.constant 0 : index
      %c0_26 = arith.constant 0 : index
      %46 = vector.load %arg7[%c0_25, %c0_26] : memref<16x1xf32, #tpu.memory_space<vmem>>, vector<16x1xf32>
      tpu.vector_store %arg7[%c0_25, %c0_26], %45 {strides = array<i32>} : memref<16x1xf32, #tpu.memory_space<vmem>>, vector<16x1xf32>,
    } else {
    }
    %c0 = arith.constant 0 : index
    %c0_1 = arith.constant 0 : index
    %3 = vector.load %arg2[%c0, %c0_1] : memref<16x128xbf16, #tpu.memory_space<vmem>>, vector<16x128xbf16>
    %c0_2 = arith.constant 0 : index
    %c0_3 = arith.constant 0 : index
    %4 = vector.load %arg3[%c0_2, %c0_3] : memref<256x128xbf16, #tpu.memory_space<vmem>>, vector<256x128xbf16>
    %cst = arith.constant dense<0.000000e+00> : vector<16x256xf32>
    %5 = tpu.matmul %3, %4, %cst {dimension_numbers = #tpu.dot_dimension_numbers<[1], [1], [0], [0], [0, 0, 1, 0], [], []>} : vector<16x128xbf16>, vector<256x128xbf16>, vector<16x256xf32> -> vector<16x256xf32>
    %c0_4 = arith.constant 0 : index
    %c0_5 = arith.constant 0 : index
    %6 = vector.load %arg4[%c0_4, %c0_5] : memref<1x256xf32, #tpu.memory_space<vmem>>, vector<1x256xf32>
    %7 = vector.broadcast %6 : vector<1x256xf32> to vector<16x256xf32>
    %8 = arith.addf %5, %7 : vector<16x256xf32>
    %cst_6 = arith.constant 0.000000e+00 : f32
    %9 = vector.broadcast %cst_6 : f32 to vector<16x256xf32>
    %10 = arith.minimumf %8, %9 : vector<16x256xf32>
    %11 = math.absf %8 : vector<16x256xf32>
    %cst_7 = arith.constant 0.000000e+00 : f32
    %12 = vector.broadcast %cst_7 : f32 to vector<16x256xf32>
    %13 = arith.subf %12, %11 : vector<16x256xf32>
    %14 = math.exp %13 : vector<16x256xf32>
    %cst_8 = arith.constant 1.000000e+00 : f32
    %15 = vector.broadcast %cst_8 : f32 to vector<16x256xf32>
    %16 = arith.addf %15, %14 : vector<16x256xf32>
    %17 = math.log %16 : vector<16x256xf32>
    %18 = arith.subf %10, %17 : vector<16x256xf32>
    %19 = arith.addf %8, %18 : vector<16x256xf32>
    %c256_i32 = arith.constant 256 : i32
    %20 = arith.muli %arg1, %c256_i32 : i32
    %21 = tpu.assume_multiple %20, 128 : i32
    %c0_9 = arith.constant 0 : index
    %22 = arith.index_cast %21 : i32 to index
    %23 = vector.load %arg5[%c0_9, %22] : memref<16x512xf32, #tpu.memory_space<vmem>>, vector<16x256xf32>
    tpu.vector_store %arg5[%c0_9, %22], %19 {strides = array<i32>} : memref<16x512xf32, #tpu.memory_space<vmem>>, vector<16x256xf32>,
    %c0_10 = arith.constant 0 : index
    %c0_11 = arith.constant 0 : index
    %24 = vector.load %arg6[%c0_10, %c0_11] : memref<16x1xf32, #tpu.memory_space<vmem>>, vector<16x1xf32>
    %cst_12 = arith.constant dense<0xFF800000> : vector<16xf32>
    %25 = vector.multi_reduction <maximumf>, %19, %cst_12 [1] : vector<16x256xf32> to vector<16xf32>
    %26 = vector.shape_cast %25 : vector<16xf32> to vector<16x1xf32>
    %27 = arith.maximumf %24, %26 : vector<16x1xf32>
    %c0_13 = arith.constant 0 : index
    %c0_14 = arith.constant 0 : index
    %28 = vector.load %arg7[%c0_13, %c0_14] : memref<16x1xf32, #tpu.memory_space<vmem>>, vector<16x1xf32>
    %29 = arith.subf %24, %27 : vector<16x1xf32>
    %30 = math.exp %29 : vector<16x1xf32>
    %31 = arith.mulf %28, %30 : vector<16x1xf32>
    %32 = vector.broadcast %27 : vector<16x1xf32> to vector<16x256xf32>
    %33 = arith.subf %19, %32 : vector<16x256xf32>
    %34 = math.exp %33 : vector<16x256xf32>
    %cst_15 = arith.constant dense<0.000000e+00> : vector<16xf32>
    %35 = vector.multi_reduction <add>, %34, %cst_15 [1] : vector<16x256xf32> to vector<16xf32>
    %36 = vector.shape_cast %35 : vector<16xf32> to vector<16x1xf32>
    %37 = arith.addf %31, %36 : vector<16x1xf32>
    %c0_16 = arith.constant 0 : index
    %c0_17 = arith.constant 0 : index
    %38 = vector.load %arg7[%c0_16, %c0_17] : memref<16x1xf32, #tpu.memory_space<vmem>>, vector<16x1xf32>
    tpu.vector_store %arg7[%c0_16, %c0_17], %37 {strides = array<i32>} : memref<16x1xf32, #tpu.memory_space<vmem>>, vector<16x1xf32>,
    %c0_18 = arith.constant 0 : index
    %c0_19 = arith.constant 0 : index
    %39 = vector.load %arg6[%c0_18, %c0_19] : memref<16x1xf32, #tpu.memory_space<vmem>>, vector<16x1xf32>
    tpu.vector_store %arg6[%c0_18, %c0_19], %27 {strides = array<i32>} : memref<16x1xf32, #tpu.memory_space<vmem>>, vector<16x1xf32>,
    %c1_i32 = arith.constant 1 : i32
    %40 = arith.cmpi eq, %arg1, %c1_i32 : i32
    %41 = arith.extui %40 : i1 to i32
    %c0_i32_20 = arith.constant 0 : i32
    %42 = arith.cmpi ne, %41, %c0_i32_20 : i32
    scf.if %42 {
      %c0_21 = arith.constant 0 : index
      %c0_22 = arith.constant 0 : index
      %43 = vector.load %arg6[%c0_21, %c0_22] : memref<16x1xf32, #tpu.memory_space<vmem>>, vector<16x1xf32>
      %c0_23 = arith.constant 0 : index
      %c0_24 = arith.constant 0 : index
      %44 = vector.load %arg7[%c0_23, %c0_24] : memref<16x1xf32, #tpu.memory_space<vmem>>, vector<16x1xf32>
      %45 = math.log %44 : vector<16x1xf32>
      %46 = arith.addf %43, %45 : vector<16x1xf32>
      %c0_25 = arith.constant 0 : index
      %c0_26 = arith.constant 0 : index
      %47 = vector.load %arg5[%c0_25, %c0_26] : memref<16x512xf32, #tpu.memory_space<vmem>>, vector<16x512xf32>
      %48 = vector.broadcast %46 : vector<16x1xf32> to vector<16x512xf32>
      %49 = arith.subf %47, %48 : vector<16x512xf32>
      %c0_27 = arith.constant 0 : index
      %c0_28 = arith.constant 0 : index
      %50 = vector.load %arg5[%c0_27, %c0_28] : memref<16x512xf32, #tpu.memory_space<vmem>>, vector<16x512xf32>
      tpu.vector_store %arg5[%c0_27, %c0_28], %49 {strides = array<i32>} : memref<16x512xf32, #tpu.memory_space<vmem>>, vector<16x512xf32>,
    } else {
    }
    return
  }
  func.func @transform_0(%arg0: i32, %arg1: i32) -> (i32, i32) {
    %c0_i32 = arith.constant 0 : i32
    %c0_i32_0 = arith.constant 0 : i32
    return %arg0, %c0_i32 : i32, i32
  }
  func.func @transform_1(%arg0: i32, %arg1: i32) -> (i32, i32) {
    %c0_i32 = arith.constant 0 : i32
    %c0_i32_0 = arith.constant 0 : i32
    return %arg1, %c0_i32 : i32, i32
  }
  func.func @transform_2(%arg0: i32, %arg1: i32) -> (i32, i32) {
    %c0_i32 = arith.constant 0 : i32
    %c0_i32_0 = arith.constant 0 : i32
    return %c0_i32, %arg1 : i32, i32
  }
  func.func @transform_3(%arg0: i32, %arg1: i32) -> (i32, i32) {
    %c0_i32 = arith.constant 0 : i32
    %c0_i32_0 = arith.constant 0 : i32
    return %arg0, %c0_i32 : i32, i32
  }
}

</mosaic_0001>

<llo_original>
// kernel: ssmax_forward.1
$region0: #{ssmax_forward.1}
  #allocation0 [shape = 'u32[]', space=smem, size = 0x4, offset = 0x4, fixed_abs, tag = 'smem constant byte address 0x4 - core index']
  #allocation1 [shape = 'u32[72,128]{1,0:T(1,128)}', space=vmem, size = 0x9000, scoped, tag = 'internal scratch']
  #allocation2 [shape = 'f32[16,1]{1,0:T(8,128)}', space=vmem, size = 0x2000, scoped, tag = 'scratch operand']
  #allocation3 [shape = 'f32[16,1]{1,0:T(8,128)}', space=vmem, size = 0x2000, scoped, tag = 'scratch operand']
  %s0 = inlined_call_operand.vmem [shape: bf16[15,128], index: 0, kind: input, shape index: {}]
  %s1 = inlined_call_operand.hbm [shape: bf16[512,128], index: 1, kind: input, shape index: {}]
  %s2 = inlined_call_operand.vmem [shape: f32[1,512], index: 2, kind: input, shape index: {}]
  %s3 = inlined_call_operand.hbm [shape: f32[15,500], index: 3, kind: output, shape index: {}]
  %s4 = sld [smem:[#allocation0]]
  $region57: #{ssmax_forward.1} parent=0
    _
  %s6 = ssub.s32 1, %s4
  %s7 = scalar_select 0, %s6, %s4
  $region1: #{ssmax_forward.1} parent=0
    #allocation4 [shape = 'u8[131072]{0}', space=vmem, size = 0x20000, scoped, tag = 'input window, operand 1']
    #allocation5 [shape = 's32[2]{0}', space=sflag, size = 0x8, scoped, tag = 'scoped memory for ssmax_forward.1']
    #allocation6 [shape = 's32[2]{0}', space=sflag, size = 0x8, scoped, tag = 'scoped memory for ssmax_forward.1']
    #allocation7 [shape = 'u8[32768]{0}', space=vmem, size = 0x8000, scoped, tag = 'output window, operand 0, single buffered']
    %8 = vsyncpa [#allocation5], 0
    %s9 = scalar_lea.sflag [#allocation5], 1
    %10 = vsyncpa %s9, 0
    %11 = vsyncpa [#allocation6], 0
    loop: start=0, step=1, limit=4
    $region2: #{ssmax_forward.1} parent=1 // loop_pre_header
      _
    $region3: #{ssmax_forward.1} parent=1 // loop_header
      %s13 = sphi 0, %s17
      %p14 = scmp.ge.s32.totalorder %s13, 4
      %s20 = sphi 0, %s32
      %s21 = sphi 0, %s28
      %s22 = sphi 0, %s20
      %s23 = sphi 0, %s21
      %s24 = sphi 0, %s22
      %s25 = sphi 0, %s23
      %s35 = sphi 0, %s37
      %s38 = sphi 0, %s35
      %s39 = sphi 0, %s38
      %s55 = sphi 0, %s39
      %s61 = sphi 0, %s63
      %s64 = sphi 0, %s61
      %s65 = sphi 0, %s64
      %s81 = sphi 0, %s65
      %s87 = sphi 0, %s89
      %s90 = sphi 0, %s87
      %s91 = sphi 0, %s90
      %s107 = sphi 0, %s91
      %s113 = sphi 0, %s115
      %s116 = sphi 0, %s113
      %s117 = sphi 0, %s116
      %s133 = sphi 0, %s117
    $region4: #{ssmax_forward.1} parent=1 // loop_header_branch
      %16 = sbr.rel (%p14) target = $region8
    $region5: #{ssmax_forward.1} parent=1 // loop_body
      %s18 = ssub.s32 %s13, 1
      %s19 = ssub.s32 %s13, 2
      %s26 = sadd.s32 1, %s21
      %p27 = scmp.ge.s32.totalorder %s26, 2
      %s28 = scalar_select %p27, 0, %s26
      %s29 = sadd.s32 1, %s20
      %s30 = scalar_select %p27, %s29, %s20
      %p31 = scmp.ge.s32.totalorder %s30, 1
      %s32 = scalar_select %p31, 0, %s30
      %s33 = ssub.s32 %s20, %s32
      %p34 = scmp.eq.s32.totalorder %s33, 0
      %s36 = sadd.s32 %s35, 1
      %s37 = scalar_select %p34, %s35, %s36
      %p40 = pneg %p34
      %p41 = scmp.eq.s32.totalorder %s13, 1
      %p42 = por %p40, %p41
      %p43 = scmp.ne.s32.totalorder %s35, %s38
      %p44 = scmp.eq.s32.totalorder %s13, 0
      %p45 = por %p43, %p44
      %p46 = scmp.ne.s32.totalorder %s35, %s38
      %p47 = scmp.eq.s32.totalorder %s18, 1
      %p48 = por %p46, %p47
      %p49 = scmp.ne.s32.totalorder %s38, %s39
      %p50 = scmp.eq.s32.totalorder %s18, 0
      %p51 = por %p49, %p50
      %p52 = scmp.ne.s32.totalorder %s38, %s39
      %p53 = scmp.eq.s32.totalorder %s19, 1
      %p54 = por %p52, %p53
      %p56 = scmp.ne.s32.totalorder %s39, %s55
      %p57 = scmp.eq.s32.totalorder %s19, 0
      %p58 = por %p56, %p57
      %s59 = ssub.s32 %s21, %s28
      %p60 = scmp.eq.s32.totalorder %s59, 0
      %s62 = sadd.s32 %s61, 1
      %s63 = scalar_select %p60, %s61, %s62
      %p66 = pneg %p60
      %p67 = scmp.eq.s32.totalorder %s13, 1
      %p68 = por %p66, %p67
      %p69 = scmp.ne.s32.totalorder %s61, %s64
      %p70 = scmp.eq.s32.totalorder %s13, 0
      %p71 = por %p69, %p70
      %p72 = scmp.ne.s32.totalorder %s61, %s64
      %p73 = scmp.eq.s32.totalorder %s18, 1
      %p74 = por %p72, %p73
      %p75 = scmp.ne.s32.totalorder %s64, %s65
      %p76 = scmp.eq.s32.totalorder %s18, 0
      %p77 = por %p75, %p76
      %p78 = scmp.ne.s32.totalorder %s64, %s65
      %p79 = scmp.eq.s32.totalorder %s19, 1
      %p80 = por %p78, %p79
      %p82 = scmp.ne.s32.totalorder %s65, %s81
      %p83 = scmp.eq.s32.totalorder %s19, 0
      %p84 = por %p82, %p83
      %s85 = ssub.s32 %s21, %s28
      %p86 = scmp.eq.s32.totalorder %s85, 0
      %s88 = sadd.s32 %s87, 1
      %s89 = scalar_select %p86, %s87, %s88
      %p92 = pneg %p86
      %p93 = scmp.eq.s32.totalorder %s13, 1
      %p94 = por %p92, %p93
      %p95 = scmp.ne.s32.totalorder %s87, %s90
      %p96 = scmp.eq.s32.totalorder %s13, 0
      %p97 = por %p95, %p96
      %p98 = scmp.ne.s32.totalorder %s87, %s90
      %p99 = scmp.eq.s32.totalorder %s18, 1
      %p100 = por %p98, %p99
      %p101 = scmp.ne.s32.totalorder %s90, %s91
      %p102 = scmp.eq.s32.totalorder %s18, 0
      %p103 = por %p101, %p102
      %p104 = scmp.ne.s32.totalorder %s90, %s91
      %p105 = scmp.eq.s32.totalorder %s19, 1
      %p106 = por %p104, %p105
      %p108 = scmp.ne.s32.totalorder %s91, %s107
      %p109 = scmp.eq.s32.totalorder %s19, 0
      %p110 = por %p108, %p109
      %s111 = ssub.s32 %s20, %s32
      %p112 = scmp.eq.s32.totalorder %s111, 0
      %s114 = sadd.s32 %s113, 1
      %s115 = scalar_select %p112, %s113, %s114
      %p118 = pneg %p112
      %p119 = scmp.eq.s32.totalorder %s13, 1
      %p120 = por %p118, %p119
      %p121 = scmp.ne.s32.totalorder %s113, %s116
      %p122 = scmp.eq.s32.totalorder %s13, 0
      %p123 = por %p121, %p122
      %p124 = scmp.ne.s32.totalorder %s113, %s116
      %p125 = scmp.eq.s32.totalorder %s18, 1
      %p126 = por %p124, %p125
      %p127 = scmp.ne.s32.totalorder %s116, %s117
      %p128 = scmp.eq.s32.totalorder %s18, 0
      %p129 = por %p127, %p128
      %p130 = scmp.ne.s32.totalorder %s116, %s117
      %p131 = scmp.eq.s32.totalorder %s19, 1
      %p132 = por %p130, %p131
      %p134 = scmp.ne.s32.totalorder %s117, %s133
      %p135 = scmp.eq.s32.totalorder %s19, 0
      %p136 = por %p134, %p135
      %p137 = scmp.le.s32.totalorder 1, %s13
      %p138 = scmp.lt.s32.totalorder %s13, 3
      %p139 = pnand %p137, %p138
      %p140 = pneg %p139
      // Predicated region
      $region9: #{ssmax_forward.1} parent=5 // pred_check
        _
      $region10: #{ssmax_forward.1} parent=5 // pred_check_branch
        %142 = sbr.rel (%p139) target = $region12
      $region11: #{ssmax_forward.1} parent=5 // pred_region
        %s143 = ssub.s32 %s13, 1
        // Predicated region
        $region13: #{ssmax_forward.1} parent=11 // pred_check
          %p144 = pneg %p51
        $region14: #{ssmax_forward.1} parent=11 // pred_check_branch
          %146 = sbr.rel (%p144) target = $region16
        $region15: #{ssmax_forward.1} parent=11 // pred_region
          %s147 = smul.u32 2, %s22
          %p148 = scmp.lt.s32.totalorder %s147, 1
          %s149 = scalar_select %p148, %s147, 1
          %s150 = smul.addr %s149, 4
          %s151 = scalar_lea.vmem %s0, %s150
          %s152 = smul.u32 2, %s22
        $region16: #{ssmax_forward.1} parent=11 // pred_fallthru
          _
      $region12: #{ssmax_forward.1} parent=5 // pred_fallthru
        _
      %p153 = scmp.lt.s32.totalorder %s13, 2
      // Predicated region
      $region17: #{ssmax_forward.1} parent=5 // pred_check
        %p154 = pneg %p153
      $region18: #{ssmax_forward.1} parent=5 // pred_check_branch
        %156 = sbr.rel (%p154) target = $region20
      $region19: #{ssmax_forward.1} parent=5 // pred_region
        // Predicated region
        $region21: #{ssmax_forward.1} parent=19 // pred_check
          %p157 = pneg %p71
        $region22: #{ssmax_forward.1} parent=19 // pred_check_branch
          %159 = sbr.rel (%p157) target = $region24
        $region23: #{ssmax_forward.1} parent=19 // pred_region
          %s160 = sand.u32 %s61, 1
          %s161 = scalar_lea.sflag [#allocation5], %s160
          %s162 = sand.u32 %s61, 1
          %s163 = smul.addr %s162, 128
          %s164 = scalar_lea.vmem [#allocation4], %s163
          %s165 = smul.u32 32, %s21
          %167 = vsyncadd %s161, 0
          %s168 = smul.addr %s165, 4
          %s169 = scalar_lea.hbm %s1, %s168
          %s170 = sshll.u32 %s169, 4
          %s171 = int_to_ptr.hbm [resolvable:$true] %s170
          %s172 = sshll.u32 %s164, 4
          %s173 = int_to_ptr.vmem [resolvable:$true] %s172
          %178 = dma.hbm_to_vmem [thread:$0]  %s171, 2048, %s173, %s161, 64, 64, 4
        $region24: #{ssmax_forward.1} parent=19 // pred_fallthru
          _
        // Predicated region
        $region25: #{ssmax_forward.1} parent=19 // pred_check
          %p179 = pneg %p97
        $region26: #{ssmax_forward.1} parent=19 // pred_check_branch
          %181 = sbr.rel (%p179) target = $region28
        $region27: #{ssmax_forward.1} parent=19 // pred_region
          %s182 = smul.u32 2, %s21
          %p183 = scmp.lt.s32.totalorder %s182, 3
          %s184 = scalar_select %p183, %s182, 3
          %s185 = scalar_lea.vmem %s2, %s184
          %s186 = smul.u32 2, %s21
        $region28: #{ssmax_forward.1} parent=19 // pred_fallthru
          _
      $region20: #{ssmax_forward.1} parent=5 // pred_fallthru
        _
      %p187 = scmp.le.s32.totalorder 1, %s13
      %p188 = scmp.lt.s32.totalorder %s13, 3
      %p189 = pnand %p187, %p188
      %p190 = pneg %p189
      // Predicated region
      $region29: #{ssmax_forward.1} parent=5 // pred_check
        _
      $region30: #{ssmax_forward.1} parent=5 // pred_check_branch
        %192 = sbr.rel (%p189) target = $region32
      $region31: #{ssmax_forward.1} parent=5 // pred_region
        %s193 = ssub.s32 %s13, 1
        %s194 = sand.u32 %s64, 1
        %s195 = scalar_lea.sflag [#allocation5], %s194
        %s196 = sand.u32 %s64, 1
        %s197 = smul.addr %s196, 128
        %s198 = scalar_lea.vmem [#allocation4], %s197
        // Predicated region
        $region33: #{ssmax_forward.1} parent=31 // pred_check
          %p199 = pneg %p77
        $region34: #{ssmax_forward.1} parent=31 // pred_check_branch
          %201 = sbr.rel (%p199) target = $region36
        $region35: #{ssmax_forward.1} parent=31 // pred_region
          %203 = dma.done %s195, 2048
        $region36: #{ssmax_forward.1} parent=31 // pred_fallthru
          _
        %s204 = smul.u32 2, %s22
        %p205 = scmp.lt.s32.totalorder %s204, 1
        %s206 = scalar_select %p205, %s204, 1
        %s207 = smul.addr %s206, 4
        %s208 = scalar_lea.vmem %s0, %s207
        %p209 = pneg %p51
        %p210 = pneg %p48
        %s211 = sand.u32 %s64, 1
        %s212 = scalar_lea.sflag [#allocation5], %s211
        %s213 = sand.u32 %s64, 1
        %s214 = smul.addr %s213, 128
        %s215 = scalar_lea.vmem [#allocation4], %s214
        %p216 = pneg %p77
        %p217 = pneg %p74
        %s218 = smul.u32 2, %s23
        %p219 = scmp.lt.s32.totalorder %s218, 3
        %s220 = scalar_select %p219, %s218, 3
        %s221 = scalar_lea.vmem %s2, %s220
        %p222 = pneg %p103
        %p223 = pneg %p100
        %p224 = pneg %p129
        %p225 = pneg %p126
        %s226 = smul.u32 2, %s22
        %p227 = scmp.lt.s32.totalorder %s226, 1
        %s228 = scalar_select %p227, %s226, 1
        %s229 = smul.addr %s228, 4
        %s230 = scalar_lea.vmem %s0, %s229
        %s231 = smul.u32 2, %s22
        %s232 = smul.u32 32, %s23
        %s233 = smul.u32 2, %s23
        %p234 = scmp.lt.s32.totalorder %s233, 3
        %s235 = scalar_select %p234, %s233, 3
        %s236 = scalar_lea.vmem %s2, %s235
        %s237 = smul.u32 2, %s23
        %s238 = smul.u32 2, %s22
        %p239 = scmp.eq.s32.totalorder %s23, 0
        // Predicated region
        $region37: #{ssmax_forward.1} parent=31 // pred_check
          %p240 = pneg %p239
        $region38: #{ssmax_forward.1} parent=31 // pred_check_branch
          %242 = sbr.rel (%p240) target = $region40
        $region39: #{ssmax_forward.1} parent=31 // pred_region
          %vm243 = vcmask 7168
          %244 = vst.msk [vmem:[#allocation2] sm:$0xff] %vm243, -inf
          %245 = vst.msk [vmem:[#allocation2 + $0x8] sm:$0xff] %vm243, -inf
          %246 = vst.msk [vmem:[#allocation3] sm:$0xff] %vm243, 0.0
          %247 = vst.msk [vmem:[#allocation3 + $0x8] sm:$0xff] %vm243, 0.0
        $region40: #{ssmax_forward.1} parent=31 // pred_fallthru
          _
        %v248 = vld [vmem:[%s230] sm:$0xf]
        %v249 = vld [vmem:[%s230 + $0x4] sm:$0xf]
        %v250 = vld [vmem:[%s198] sm:$0xf]
        %v251 = vld [vmem:[%s198 + $0x4] sm:$0xf]
        %v252 = vld [vmem:[%s198 + $0x8] sm:$0xf]
        %v253 = vld [vmem:[%s198 + $0xc] sm:$0xf]
        %v254 = vld [vmem:[%s198 + $0x10] sm:$0xf]
        %v255 = vld [vmem:[%s198 + $0x14] sm:$0xf]
        %v256 = vld [vmem:[%s198 + $0x18] sm:$0xf]
        %v257 = vld [vmem:[%s198 + $0x1c] sm:$0xf]
        %v258 = vld [vmem:[%s198 + $0x20] sm:$0xf]
        %v259 = vld [vmem:[%s198 + $0x24] sm:$0xf]
        %v260 = vld [vmem:[%s198 + $0x28] sm:$0xf]
        %v261 = vld [vmem:[%s198 + $0x2c] sm:$0xf]
        %v262 = vld [vmem:[%s198 + $0x30] sm:$0xf]
        %v263 = vld [vmem:[%s198 + $0x34] sm:$0xf]
        %v264 = vld [vmem:[%s198 + $0x38] sm:$0xf]
        %v265 = vld [vmem:[%s198 + $0x3c] sm:$0xf]
        %v266 = vld [vmem:[%s198 + $0x40] sm:$0xf]
        %v267 = vld [vmem:[%s198 + $0x44] sm:$0xf]
        %v268 = vld [vmem:[%s198 + $0x48] sm:$0xf]
        %v269 = vld [vmem:[%s198 + $0x4c] sm:$0xf]
        %v270 = vld [vmem:[%s198 + $0x50] sm:$0xf]
        %v271 = vld [vmem:[%s198 + $0x54] sm:$0xf]
        %v272 = vld [vmem:[%s198 + $0x58] sm:$0xf]
        %v273 = vld [vmem:[%s198 + $0x5c] sm:$0xf]
        %v274 = vld [vmem:[%s198 + $0x60] sm:$0xf]
        %v275 = vld [vmem:[%s198 + $0x64] sm:$0xf]
        %v276 = vld [vmem:[%s198 + $0x68] sm:$0xf]
        %v277 = vld [vmem:[%s198 + $0x6c] sm:$0xf]
        %v278 = vld [vmem:[%s198 + $0x70] sm:$0xf]
        %v279 = vld [vmem:[%s198 + $0x74] sm:$0xf]
        %v280 = vld [vmem:[%s198 + $0x78] sm:$0xf]
        %v281 = vld [vmem:[%s198 + $0x7c] sm:$0xf]
        %v282 = vld [vmem:[%s236] sm:$0x3]
        %v284 = vperm.slane %v282, 0
        %v285 = vperm.slane %v282, 1
        %v290 = vunpack.c.l.b16 %v248
        %v291 = vunpack.c.l.b16 %v249
        %v292 = vpack.c.b16 %v291, %v290
        %v326 = vunpack.c.l.b16 %v250
        %v327 = vunpack.c.l.b16 %v251
        %v328 = vunpack.c.l.b16 %v252
        %v329 = vunpack.c.l.b16 %v253
        %v330 = vunpack.c.l.b16 %v254
        %v331 = vunpack.c.l.b16 %v255
        %v332 = vunpack.c.l.b16 %v256
        %v333 = vunpack.c.l.b16 %v257
        %v334 = vunpack.c.l.b16 %v258
        %v335 = vunpack.c.l.b16 %v259
        %v336 = vunpack.c.l.b16 %v260
        %v337 = vunpack.c.l.b16 %v261
        %v338 = vunpack.c.l.b16 %v262
        %v339 = vunpack.c.l.b16 %v263
        %v340 = vunpack.c.l.b16 %v264
        %v341 = vunpack.c.l.b16 %v265
        %v342 = vunpack.c.l.b16 %v266
        %v343 = vunpack.c.l.b16 %v267
        %v344 = vunpack.c.l.b16 %v268
        %v345 = vunpack.c.l.b16 %v269
        %v346 = vunpack.c.l.b16 %v270
        %v347 = vunpack.c.l.b16 %v271
        %v348 = vunpack.c.l.b16 %v272
        %v349 = vunpack.c.l.b16 %v273
        %v350 = vunpack.c.l.b16 %v274
        %v351 = vunpack.c.l.b16 %v275
        %v352 = vunpack.c.l.b16 %v276
        %v353 = vunpack.c.l.b16 %v277
        %v354 = vunpack.c.l.b16 %v278
        %v355 = vunpack.c.l.b16 %v279
        %v356 = vunpack.c.l.b16 %v280
        %v357 = vunpack.c.l.b16 %v281
        %v358 = vpack.c.b16 %v327, %v326
        %v359 = vpack.c.b16 %v329, %v328
        %v360 = vpack.c.b16 %v331, %v330
        %v361 = vpack.c.b16 %v333, %v332
        %v362 = vpack.c.b16 %v335, %v334
        %v363 = vpack.c.b16 %v337, %v336
        %v364 = vpack.c.b16 %v339, %v338
        %v365 = vpack.c.b16 %v341, %v340
        %v366 = vpack.c.b16 %v343, %v342
        %v367 = vpack.c.b16 %v345, %v344
        %v368 = vpack.c.b16 %v347, %v346
        %v369 = vpack.c.b16 %v349, %v348
        %v370 = vpack.c.b16 %v351, %v350
        %v371 = vpack.c.b16 %v353, %v352
        %v372 = vpack.c.b16 %v355, %v354
        %v373 = vpack.c.b16 %v357, %v356
        %390 = vmatpush.bf16.xpose.msra.mxu0 %v365
        %391 = vmatpush.bf16.xpose.msra.mxu0 %v364
        %392 = vmatpush.bf16.xpose.msra.mxu0 %v363
        %393 = vmatpush.bf16.xpose.msra.mxu0 %v362
        %394 = vmatpush.bf16.xpose.msra.mxu0 %v361
        %395 = vmatpush.bf16.xpose.msra.mxu0 %v360
        %396 = vmatpush.bf16.xpose.msra.mxu0 %v359
        %397 = vmatpush.bf16.xpose.msra.mxu0 %v358
        %398 = vmatmul.bf16.gmra.mxu0 %v292
        %v399 = vpop.f32.mrf.mxu0
        %v400 = vadd.f32 %v284, %v399
        %v401 = vpop.f32.mrf.mxu0
        %v402 = vadd.f32 %v284, %v401
        %403 = vdwg.mxu0
        %404 = vmatpush.bf16.xpose.msra.mxu0 %v373
        %405 = vmatpush.bf16.xpose.msra.mxu0 %v372
        %406 = vmatpush.bf16.xpose.msra.mxu0 %v371
        %407 = vmatpush.bf16.xpose.msra.mxu0 %v370
        %408 = vmatpush.bf16.xpose.msra.mxu0 %v369
        %409 = vmatpush.bf16.xpose.msra.mxu0 %v368
        %410 = vmatpush.bf16.xpose.msra.mxu0 %v367
        %411 = vmatpush.bf16.xpose.msra.mxu0 %v366
        %412 = vmatmul.bf16.gmra.mxu0 %v292
        %v413 = vpop.f32.mrf.mxu0
        %v414 = vadd.f32 %v285, %v413
        %v415 = vpop.f32.mrf.mxu0
        %v416 = vadd.f32 %v285, %v415
        %417 = vdwg.mxu0
        %v418 = vmin.f32 %v400, 0.0
        %v419 = vmin.f32 %v414, 0.0
        %v420 = vmin.f32 %v402, 0.0
        %v421 = vmin.f32 %v416, 0.0
        %v422 = vand.u32 2147483647, %v400
        %v423 = vand.u32 2147483647, %v414
        %v424 = vand.u32 2147483647, %v402
        %v425 = vand.u32 2147483647, %v416
        %v426 = vsub.f32 0.0, %v422
        %v427 = vsub.f32 0.0, %v423
        %v428 = vsub.f32 0.0, %v424
        %v429 = vsub.f32 0.0, %v425
        %v430 = vmul.f32 %v426, 1.442695
        %v431 = vpow.pop %v430
        %v432 = vmul.f32 %v427, 1.442695
        %v433 = vpow.pop %v432
        %v434 = vmul.f32 %v428, 1.442695
        %v435 = vpow.pop %v434
        %v436 = vmul.f32 %v429, 1.442695
        %v437 = vpow.pop %v436
        %v438 = vadd.f32 %v431, 1.0
        %v439 = vadd.f32 %v433, 1.0
        %v440 = vadd.f32 %v435, 1.0
        %v441 = vadd.f32 %v437, 1.0
        %v442 = vlog2.pop %v438
        %v443 = vmul.f32 %v442, 0.6931472
        %v444 = vlog2.pop %v439
        %v445 = vmul.f32 %v444, 0.6931472
        %v446 = vlog2.pop %v440
        %v447 = vmul.f32 %v446, 0.6931472
        %v448 = vlog2.pop %v441
        %v449 = vmul.f32 %v448, 0.6931472
        %v450 = vsub.f32 %v418, %v443
        %v451 = vsub.f32 %v419, %v445
        %v452 = vsub.f32 %v420, %v447
        %v453 = vsub.f32 %v421, %v449
        %v454 = vadd.f32 %v400, %v450
        %v455 = vadd.f32 %v414, %v451
        %v456 = vadd.f32 %v402, %v452
        %v457 = vadd.f32 %v416, %v453
        %s458 = smul.u32 %s23, 256
        %s459 = sshra.s32 %s458, 7
        %s460 = sand.u32 %s458, 127
        %s461 = smul.addr %s459, 8
        %s462 = scalar_lea.vmem [#allocation7], %s461
        %463 = vst [vmem:[%s462] sm:$0xff] %v454
        %464 = vst [vmem:[%s462 + $0x8] sm:$0xff] %v455
        %465 = vst [vmem:[%s462 + $0x20] sm:$0xff] %v456
        %466 = vst [vmem:[%s462 + $0x28] sm:$0xff] %v457
        %v467 = vld [vmem:[#allocation2] sm:$0xff]
        %v468 = vld [vmem:[#allocation2 + $0x8] sm:$0xff]
        %v469 = vmax.f32 %v454, %v455
        %470 = vmax.xlane.f32.xlu0 %v469
        %v471 = vpop.xlane.xlu0 %470
        %v472 = vmax.f32 %v456, %v457
        %473 = vmax.xlane.f32.xlu0 %v472
        %v474 = vpop.xlane.xlu0 %473
        %v475 = vmax.f32 %v467, %v471
        %v476 = vmax.f32 %v468, %v474
        %v477 = vld [vmem:[#allocation3] sm:$0xff]
        %v478 = vld [vmem:[#allocation3 + $0x8] sm:$0xff]
        %v479 = vsub.f32 %v467, %v475
        %v480 = vsub.f32 %v468, %v476
        %v481 = vmul.f32 %v479, 1.442695
        %v482 = vpow.pop %v481
        %v483 = vmul.f32 %v480, 1.442695
        %v484 = vpow.pop %v483
        %v485 = vmul.f32 %v477, %v482
        %v486 = vmul.f32 %v478, %v484
        %488 = vset.pattern.permute.xlu0 0
        %489 = vperm.xlu0 %488, %v475
        %v490 = vpop.permute.xlu0 %489
        %493 = vset.pattern.permute.xlu0 0
        %494 = vperm.xlu0 %493, %v476
        %v495 = vpop.permute.xlu0 %494
        %v497 = vsub.f32 %v454, %v490
        %v498 = vsub.f32 %v455, %v490
        %v499 = vsub.f32 %v456, %v495
        %v500 = vsub.f32 %v457, %v495
        %v501 = vmul.f32 %v497, 1.442695
        %v502 = vpow.pop %v501
        %v503 = vmul.f32 %v498, 1.442695
        %v504 = vpow.pop %v503
        %v505 = vmul.f32 %v499, 1.442695
        %v506 = vpow.pop %v505
        %v507 = vmul.f32 %v500, 1.442695
        %v508 = vpow.pop %v507
        %v509 = vadd.f32 %v502, %v504
        %510 = vadd.xlane.f32.xlu0 %v509
        %v511 = vpop.xlane.xlu0 %510
        %v512 = vadd.f32 %v506, %v508
        %513 = vadd.xlane.f32.xlu0 %v512
        %v514 = vpop.xlane.xlu0 %513
        %v515 = vadd.f32 %v485, %v511
        %v516 = vadd.f32 %v486, %v514
        %vm517 = vcmask 7168
        %518 = vst.msk [vmem:[#allocation3] sm:$0xff] %vm517, %v515
        %519 = vst.msk [vmem:[#allocation3 + $0x8] sm:$0xff] %vm517, %v516
        %520 = vst.msk [vmem:[#allocation2] sm:$0xff] %vm517, %v475
        %521 = vst.msk [vmem:[#allocation2 + $0x8] sm:$0xff] %vm517, %v476
        %p522 = scmp.eq.s32.totalorder %s23, 1
        // Predicated region
        $region41: #{ssmax_forward.1} parent=31 // pred_check
          %p523 = pneg %p522
        $region42: #{ssmax_forward.1} parent=31 // pred_check_branch
          %525 = sbr.rel (%p523) target = $region44
        $region43: #{ssmax_forward.1} parent=31 // pred_region
          %v526 = vld [vmem:[#allocation2] sm:$0xff]
          %v527 = vld [vmem:[#allocation2 + $0x8] sm:$0xff]
          %v528 = vld [vmem:[#allocation3] sm:$0xff]
          %v529 = vld [vmem:[#allocation3 + $0x8] sm:$0xff]
          %v530 = vlog2.pop %v528
          %v531 = vmul.f32 %v530, 0.6931472
          %v532 = vlog2.pop %v529
          %v533 = vmul.f32 %v532, 0.6931472
          %v534 = vadd.f32 %v526, %v531
          %v535 = vadd.f32 %v527, %v533
          %v536 = vld [vmem:[#allocation7] sm:$0xff]
          %v537 = vld [vmem:[#allocation7 + $0x8] sm:$0xff]
          %v538 = vld [vmem:[#allocation7 + $0x10] sm:$0xff]
          %v539 = vld [vmem:[#allocation7 + $0x18] sm:$0xff]
          %v540 = vld [vmem:[#allocation7 + $0x20] sm:$0xff]
          %v541 = vld [vmem:[#allocation7 + $0x28] sm:$0xff]
          %v542 = vld [vmem:[#allocation7 + $0x30] sm:$0xff]
          %v543 = vld [vmem:[#allocation7 + $0x38] sm:$0xff]
          %545 = vset.pattern.permute.xlu0 0
          %546 = vperm.xlu0 %545, %v534
          %v547 = vpop.permute.xlu0 %546
          %550 = vset.pattern.permute.xlu0 0
          %551 = vperm.xlu0 %550, %v535
          %v552 = vpop.permute.xlu0 %551
          %v554 = vsub.f32 %v536, %v547
          %v555 = vsub.f32 %v537, %v547
          %v556 = vsub.f32 %v538, %v547
          %v557 = vsub.f32 %v539, %v547
          %v558 = vsub.f32 %v540, %v552
          %v559 = vsub.f32 %v541, %v552
          %v560 = vsub.f32 %v542, %v552
          %v561 = vsub.f32 %v543, %v552
          %562 = vst [vmem:[#allocation7] sm:$0xff] %v554
          %563 = vst [vmem:[#allocation7 + $0x8] sm:$0xff] %v555
          %564 = vst [vmem:[#allocation7 + $0x10] sm:$0xff] %v556
          %565 = vst [vmem:[#allocation7 + $0x18] sm:$0xff] %v557
          %566 = vst [vmem:[#allocation7 + $0x20] sm:$0xff] %v558
          %567 = vst [vmem:[#allocation7 + $0x28] sm:$0xff] %v559
          %568 = vst [vmem:[#allocation7 + $0x30] sm:$0xff] %v560
          %569 = vst [vmem:[#allocation7 + $0x38] sm:$0xff] %v561
        $region44: #{ssmax_forward.1} parent=31 // pred_fallthru
          _
        // Predicated region
        $region45: #{ssmax_forward.1} parent=31 // pred_check
          %p570 = pneg %p126
        $region46: #{ssmax_forward.1} parent=31 // pred_check_branch
          %572 = sbr.rel (%p570) target = $region48
        $region47: #{ssmax_forward.1} parent=31 // pred_region
          %s573 = smul.u32 2, %s22
          %575 = vsyncadd [#allocation6], 0
          %s576 = smul.addr %s573, 4
          %s577 = smul.addr %s576, 8
          %s578 = scalar_lea.hbm %s3, %s577
          %s579 = sshll.u32 [#allocation7], 4
          %s580 = int_to_ptr.vmem [resolvable:$true] %s579
          %s581 = sshll.u32 %s578, 4
          %s582 = int_to_ptr.hbm [resolvable:$true] %s581
          %587 = dma.vmem_to_hbm [thread:$0]  %s580, 1024, %s582, [#allocation6], 512, 512, 32
        $region48: #{ssmax_forward.1} parent=31 // pred_fallthru
          _
        // Predicated region
        $region49: #{ssmax_forward.1} parent=31 // pred_check
          %p588 = pneg %p126
        $region50: #{ssmax_forward.1} parent=31 // pred_check_branch
          %590 = sbr.rel (%p588) target = $region52
        $region51: #{ssmax_forward.1} parent=31 // pred_region
          %592 = dma.done [#allocation6], 1024
        $region52: #{ssmax_forward.1} parent=31 // pred_fallthru
          _
      $region32: #{ssmax_forward.1} parent=5 // pred_fallthru
        _
      %p593 = scmp.le.s32.totalorder 2, %s13
      // Predicated region
      $region53: #{ssmax_forward.1} parent=5 // pred_check
        %p594 = pneg %p593
      $region54: #{ssmax_forward.1} parent=5 // pred_check_branch
        %596 = sbr.rel (%p594) target = $region56
      $region55: #{ssmax_forward.1} parent=5 // pred_region
        %s597 = ssub.s32 %s13, 2
      $region56: #{ssmax_forward.1} parent=5 // pred_fallthru
        _
    $region6: #{ssmax_forward.1} parent=1 // loop_footer
      %s17 = sadd.s32 1, %s13
    $region7: #{ssmax_forward.1} parent=1 // loop_footer_branch
      %12 = sbr.rel target = $region3
    $region8: #{ssmax_forward.1} parent=1 // loop_exit
      _
    %598 = vsyncpa [#allocation5], 1
    %s599 = scalar_lea.sflag [#allocation5], 1
    %600 = vsyncpa %s599, 1
    %601 = vsyncpa [#allocation6], 1
    %s602 = scalar_lea.sflag [#allocation6], 1
    %603 = vsyncpa %s602, 1

</llo_original>
